<compile_context>
chip_gen: v5e
topology: v5e:2x2
jax: 0.10.0
libtpu: 0.0.40
codegen_flags: <defaults>
</compile_context>

<pallas_src>
import jax
import jax.numpy as jnp
from jax.experimental import pallas as pl
from jax.experimental.pallas import tpu as pltpu

N_LATENT = 32  # fixed in the PyTorch module (self.n_latent = 32)


def _encoder_kernel(x_ref, sel_ref, repf_ref, phase_ref, w1_ref, pvec_ref,
                    w2_ref, b2_ref, lnavg_ref, o_ref):
    j = pl.program_id(1)

    # ---- gather this block's F features, broadcast to (TB, F*32) with the
    #      Fourier frequencies folded into the resident replication matrix ----
    xs = jnp.dot(x_ref[...], sel_ref[0], preferred_element_type=jnp.float32)    # (TB, F)
    arg = jnp.dot(xs, repf_ref[...], preferred_element_type=jnp.float32)        # (TB, FK)

    # ---- Fourier positional encoding with a single transcendental:
    #      sin lanes use phase 0, cos lanes use phase pi/2 ----
    pe = jnp.sin(arg + phase_ref[...])

    # ---- per-feature Linear(32,32) as one block-diagonal matmul + bias ----
    b1 = pvec_ref[0, 0:1, :]
    h = jnp.dot(pe, w1_ref[0], preferred_element_type=jnp.float32) + b1

    # ---- per-feature LayerNorm(32): two independent segmented-mean matmuls ----
    mu = jnp.dot(h, lnavg_ref[...], preferred_element_type=jnp.float32)
    m2 = jnp.dot(h * h, lnavg_ref[...], preferred_element_type=jnp.float32)
    var = jnp.maximum(m2 - mu * mu, 0.0)                     # biased var (torch LN)
    gamma = pvec_ref[0, 1:2, :]
    beta = pvec_ref[0, 2:3, :]
    hn = (h - mu) * jax.lax.rsqrt(var + 1e-5) * gamma + beta

    # ---- exact (erf) GELU, matching torch nn.GELU() default ----
    a = 0.5 * hn * (1.0 + jax.lax.erf(hn * 0.7071067811865476))

    # ---- fused softmax-weighted output matmul over K = F*32
    #      (softmax weight already folded into w2 during preprocessing) ----
    contrib = jnp.dot(a, w2_ref[0], preferred_element_type=jnp.float32)

    @pl.when(j == 0)
    def _():
        o_ref[...] = contrib + b2_ref[...]        # folded softmax-weighted bias

    @pl.when(j > 0)
    def _():
        o_ref[...] = o_ref[...] + contrib


def prepare_encoder_params(params):
    """One-time parameter preprocessing (call once per weight update)."""
    f32 = jnp.float32
    n_feat = params["W1"].shape[0]
    n_embed = params["W2"].shape[-1]

    w_sm = jax.nn.softmax(params["weight"].astype(f32))

    F = min(n_feat, 8)                 # K = 32*F MXU depth (K=256 fine on v5e too)
    n_fblocks = -(-n_feat // F)
    n_fp = n_fblocks * F
    pad = n_fp - n_feat
    FK = F * N_LATENT

    def padf(a):
        return jnp.pad(a.astype(f32), ((0, pad),) + ((0, 0),) * (a.ndim - 1))

    W1p = padf(params["W1"])           # (n_fp, 32, 32)
    b1p = padf(params["b1"])           # (n_fp, 1, 32)
    gp = padf(params["gamma"])
    bp = padf(params["beta"])
    W2p = padf(params["W2"])           # (n_fp, 32, n_embed)
    wp = jnp.pad(w_sm, (0, pad))       # (n_fp,)

    eyeF = jnp.eye(F, dtype=f32)

    # block-diagonal first Linear: (n_fblocks, FK, FK)
    W1b = W1p.reshape(n_fblocks, F, N_LATENT, N_LATENT)
    W1_bd = (W1b[:, :, None, :, :] * eyeF[None, :, :, None, None])
    W1_bd = W1_bd.transpose(0, 1, 3, 2, 4).reshape(n_fblocks, FK, FK)

    # stacked output Linear with softmax weight folded in: (n_fblocks, FK, n_embed)
    W2_st = (W2p * wp[:, None, None]).reshape(n_fblocks, FK, n_embed)

    # packed per-block rows [b1; gamma; beta]: (n_fblocks, 3, FK)
    b1_r = b1p[:, 0, :].reshape(n_fblocks, FK)
    g_r = gp[:, 0, :].reshape(n_fblocks, FK)
    be_r = bp[:, 0, :].reshape(n_fblocks, FK)
    pvec = jnp.stack([b1_r, g_r, be_r], axis=1)

    # softmax-weighted output bias, folded once: (1, n_embed)
    b2_mix = (w_sm[:, None] * params["b2"].astype(f32)[:, 0, :]).sum(0, keepdims=True)

    # compact per-block feature selector: sel[g, i, f] = [i == g*F + f]
    fid = jnp.arange(n_fp).reshape(n_fblocks, F)
    sel = (jnp.arange(n_feat)[None, :, None] == fid[:, None, :]).astype(f32)

    # resident replication matrix with EXACT Fourier freqs 0.1 * 2**k folded in
    freqs = 0.1 * (2.0 ** jnp.arange(N_LATENT // 2, dtype=f32))
    freq_pat = jnp.concatenate([freqs, freqs])[None, :]          # (1, 32)  sin|cos
    repf = jnp.kron(eyeF, freq_pat)                              # (F, FK)

    # resident phase row: 0 for sin lanes, pi/2 for cos lanes
    phase = jnp.tile(
        jnp.concatenate([jnp.zeros((N_LATENT // 2,), f32),
                         jnp.full((N_LATENT // 2,), jnp.pi / 2, f32)]), F)[None, :]

    # resident per-32-lane-group averaging matrix for LN stats (FK, FK)
    lnavg = jnp.kron(eyeF, jnp.ones((N_LATENT, N_LATENT), f32) / N_LATENT)

    return {
        "w_sm": w_sm, "sel": sel, "repf": repf, "phase": phase,
        "W1_bd": W1_bd, "pvec": pvec, "W2_st": W2_st, "b2_mix": b2_mix,
        "lnavg": lnavg,
        "dims": (n_feat, n_embed, F, n_fblocks, FK),
    }


def _pick_batch_tile(B):
    if B <= 8:
        return B
    # aim for >=2 batch tiles (v7x has 2 TensorCores on the parallel axis) while
    # keeping tiles big enough to amortise the ~0.35us per-step overhead.
    tb = min(1024, -(-B // 2))
    tb = -(-tb // 8) * 8
    return min(tb, B)


def batch_encoder_cont_forward(batch_factors, prep):
    """Returns (batch_embed (B, n_embed) f32, softmax weight (n_feat,) f32)."""
    n_feat, n_embed, F, n_fblocks, FK = prep["dims"]
    B = batch_factors.shape[0]
    x = batch_factors.astype(jnp.float32)

    TB = _pick_batch_tile(B)
    grid = (pl.cdiv(B, TB), n_fblocks)

    # VMEM budget: double-buffered streamed blocks + resident tables + output.
    streamed = TB * n_feat + n_feat * F + FK * FK + 3 * FK + FK * n_embed + TB * n_embed
    resident = F * FK + FK + n_embed + FK * FK
    vmem_est = 4 * (2 * streamed + 2 * resident)
    vmem_limit = int(min(64 << 20, max(32 << 20, 2 * vmem_est)))

    batch_embed = pl.pallas_call(
        _encoder_kernel,
        out_shape=jax.ShapeDtypeStruct((B, n_embed), jnp.float32),
        grid=grid,
        in_specs=[
            pl.BlockSpec((TB, n_feat), lambda i, j: (i, 0)),           # x (batch tile)
            pl.BlockSpec((1, n_feat, F), lambda i, j: (j, 0, 0)),      # compact selector
            pl.BlockSpec((F, FK), lambda i, j: (0, 0)),                # freq replication
            pl.BlockSpec((1, FK), lambda i, j: (0, 0)),                # sin/cos phase
            pl.BlockSpec((1, FK, FK), lambda i, j: (j, 0, 0)),         # block-diag W1
            pl.BlockSpec((1, 3, FK), lambda i, j: (j, 0, 0)),          # [b1;gamma;beta]
            pl.BlockSpec((1, FK, n_embed), lambda i, j: (j, 0, 0)),    # w-scaled W2
            pl.BlockSpec((1, n_embed), lambda i, j: (0, 0)),           # weighted b2
            pl.BlockSpec((FK, FK), lambda i, j: (0, 0)),               # LN group-avg
        ],
        out_specs=pl.BlockSpec((TB, n_embed), lambda i, j: (i, 0)),
        compiler_params=pltpu.CompilerParams(
            dimension_semantics=("parallel", "arbitrary"),
            vmem_limit_bytes=vmem_limit),
    )(x, prep["sel"], prep["repf"], prep["phase"], prep["W1_bd"], prep["pvec"],
      prep["W2_st"], prep["b2_mix"], prep["lnavg"])

    return batch_embed, prep["w_sm"]


def init_params(key, n_feat, n_embed):
    ks = jax.random.split(key, 7)
    return {
        "weight": jax.random.normal(ks[0], (n_feat,), jnp.float32),
        "W1": 0.2 * jax.random.normal(ks[1], (n_feat, N_LATENT, N_LATENT), jnp.float32),
        "b1": 0.1 * jax.random.normal(ks[2], (n_feat, 1, N_LATENT), jnp.float32),
        "gamma": 1.0 + 0.05 * jax.random.normal(ks[3], (n_feat, 1, N_LATENT), jnp.float32),
        "beta": 0.05 * jax.random.normal(ks[4], (n_feat, 1, N_LATENT), jnp.float32),
        "W2": 0.2 * jax.random.normal(ks[5], (n_feat, N_LATENT, n_embed), jnp.float32),
        "b2": 0.1 * jax.random.normal(ks[6], (n_feat, 1, n_embed), jnp.float32),
    }


def reference_forward(batch_factors, params):
    """Pure-JAX mirror of the PyTorch forward (eval mode) for validation."""
    w_sm = jax.nn.softmax(params["weight"])
    half = N_LATENT // 2
    freq = 0.1 * (2.0 ** jnp.arange(half, dtype=jnp.float32))
    B = batch_factors.shape[0]
    out = jnp.zeros((B, params["W2"].shape[-1]), jnp.float32)
    for i in range(batch_factors.shape[1]):
        xi = batch_factors[:, i:i + 1]
        arg = xi * freq
        pe = jnp.concatenate([jnp.sin(arg), jnp.cos(arg)], axis=-1)
        h = pe @ params["W1"][i] + params["b1"][i, 0]
        mu = h.mean(-1, keepdims=True)
        var = ((h - mu) ** 2).mean(-1, keepdims=True)
        hn = (h - mu) / jnp.sqrt(var + 1e-5) * params["gamma"][i, 0] + params["beta"][i, 0]
        a = 0.5 * hn * (1.0 + jax.lax.erf(hn * 0.7071067811865476))
        out = out + w_sm[i] * (a @ params["W2"][i] + params["b2"][i, 0])
    return out, w_sm


if __name__ == "__main__":
    B, N_FEAT, N_EMBED = 8, 4, 128   # n_embed=128 keeps the output store lane-dense

    key = jax.random.PRNGKey(0)
    k_x, k_p = jax.random.split(key)
    batch_factors = jax.random.uniform(k_x, (B, N_FEAT), jnp.float32)  # continuous in [0, 1]
    params = init_params(k_p, N_FEAT, N_EMBED)

    prep = prepare_encoder_params(params)            # one-time weight preprocessing
    embed, weight = batch_encoder_cont_forward(batch_factors, prep)
    jax.block_until_ready((embed, weight))

    ref_embed, ref_weight = reference_forward(batch_factors, params)
    assert embed.shape == (B, N_EMBED) and weight.shape == (N_FEAT,)
    # tolerance covers f32 sin range-reduction + the pi/2 phase trick at the
    # largest Fourier frequency (0.1 * 2**15) and the E[h^2]-mu^2 variance form.
    err = float(jnp.max(jnp.abs(embed - ref_embed)))
    assert jnp.allclose(embed, ref_embed, atol=2e-3, rtol=2e-3), err
    assert jnp.allclose(weight, ref_weight, atol=1e-6)

    print("KERNEL_OK")
</pallas_src>

<mosaic_0001>
module attributes {stable_mosaic.version = 11 : i64} {
  func.func @_encoder_kernel(%arg0: i32, %arg1: i32, %arg2: memref<8x4xf32, #tpu.memory_space<vmem>>, %arg3: memref<1x4x4xf32, #tpu.memory_space<vmem>>, %arg4: memref<4x128xf32, #tpu.memory_space<vmem>>, %arg5: memref<1x128xf32, #tpu.memory_space<vmem>>, %arg6: memref<1x128x128xf32, #tpu.memory_space<vmem>>, %arg7: memref<1x3x128xf32, #tpu.memory_space<vmem>>, %arg8: memref<1x128x128xf32, #tpu.memory_space<vmem>>, %arg9: memref<1x128xf32, #tpu.memory_space<vmem>>, %arg10: memref<128x128xf32, #tpu.memory_space<vmem>>, %arg11: memref<8x128xf32, #tpu.memory_space<vmem>>) attributes {dimension_semantics = [#tpu.dimension_semantics<parallel>, #tpu.dimension_semantics<arbitrary>], iteration_bounds = array<i64: 1, 1>, scalar_prefetch = 0 : i64, scratch_operands = 0 : i64, tpu.core_type = #tpu.core_type<tc>, window_params = [{transform_indices = @transform_0, window_bounds = array<i64: 8, 4>}, {transform_indices = @transform_1, window_bounds = array<i64: 1, 4, 4>}, {pipeline_mode = #tpu.pipeline_mode<synchronous>, transform_indices = @transform_2, window_bounds = array<i64: 4, 128>}, {pipeline_mode = #tpu.pipeline_mode<synchronous>, transform_indices = @transform_3, window_bounds = array<i64: 1, 128>}, {transform_indices = @transform_4, window_bounds = array<i64: 1, 128, 128>}, {transform_indices = @transform_5, window_bounds = array<i64: 1, 3, 128>}, {transform_indices = @transform_6, window_bounds = array<i64: 1, 128, 128>}, {pipeline_mode = #tpu.pipeline_mode<synchronous>, transform_indices = @transform_7, window_bounds = array<i64: 1, 128>}, {pipeline_mode = #tpu.pipeline_mode<synchronous>, transform_indices = @transform_8, window_bounds = array<i64: 128, 128>}, {transform_indices = @transform_9, window_bounds = array<i64: 8, 128>}]} {
    %c0 = arith.constant 0 : index
    %c0_0 = arith.constant 0 : index
    %0 = vector.load %arg2[%c0, %c0_0] : memref<8x4xf32, #tpu.memory_space<vmem>>, vector<8x4xf32>
    %c0_1 = arith.constant 0 : index
    %c0_2 = arith.constant 0 : index
    %c0_3 = arith.constant 0 : index
    %1 = vector.load %arg3[%c0_1, %c0_2, %c0_3] : memref<1x4x4xf32, #tpu.memory_space<vmem>>, vector<1x4x4xf32>
    %2 = vector.shape_cast %1 : vector<1x4x4xf32> to vector<4x4xf32>
    %cst = arith.constant dense<0.000000e+00> : vector<8x4xf32>
    %3 = tpu.matmul %0, %2, %cst {dimension_numbers = #tpu.dot_dimension_numbers<[1], [0], [0], [1], [0, 0, 1, 1], [], []>} : vector<8x4xf32>, vector<4x4xf32>, vector<8x4xf32> -> vector<8x4xf32>
    %c0_4 = arith.constant 0 : index
    %c0_5 = arith.constant 0 : index
    %4 = vector.load %arg4[%c0_4, %c0_5] : memref<4x128xf32, #tpu.memory_space<vmem>>, vector<4x128xf32>
    %cst_6 = arith.constant dense<0.000000e+00> : vector<8x128xf32>
    %5 = tpu.matmul %3, %4, %cst_6 {dimension_numbers = #tpu.dot_dimension_numbers<[1], [0], [0], [1], [0, 0, 1, 1], [], []>} : vector<8x4xf32>, vector<4x128xf32>, vector<8x128xf32> -> vector<8x128xf32>
    %c0_7 = arith.constant 0 : index
    %c0_8 = arith.constant 0 : index
    %6 = vector.load %arg5[%c0_7, %c0_8] : memref<1x128xf32, #tpu.memory_space<vmem>>, vector<1x128xf32>
    %7 = vector.broadcast %6 : vector<1x128xf32> to vector<8x128xf32>
    %8 = arith.addf %5, %7 : vector<8x128xf32>
    %9 = math.sin %8 : vector<8x128xf32>
    %c0_9 = arith.constant 0 : index
    %c0_10 = arith.constant 0 : index
    %c0_11 = arith.constant 0 : index
    %10 = vector.load %arg7[%c0_9, %c0_10, %c0_11] : memref<1x3x128xf32, #tpu.memory_space<vmem>>, vector<1x1x128xf32>
    %11 = vector.shape_cast %10 : vector<1x1x128xf32> to vector<1x128xf32>
    %c0_12 = arith.constant 0 : index
    %c0_13 = arith.constant 0 : index
    %c0_14 = arith.constant 0 : index
    %12 = vector.load %arg6[%c0_12, %c0_13, %c0_14] : memref<1x128x128xf32, #tpu.memory_space<vmem>>, vector<1x128x128xf32>
    %13 = vector.shape_cast %12 : vector<1x128x128xf32> to vector<128x128xf32>
    %cst_15 = arith.constant dense<0.000000e+00> : vector<8x128xf32>
    %14 = tpu.matmul %9, %13, %cst_15 {dimension_numbers = #tpu.dot_dimension_numbers<[1], [0], [0], [1], [0, 0, 1, 1], [], []>} : vector<8x128xf32>, vector<128x128xf32>, vector<8x128xf32> -> vector<8x128xf32>
    %15 = vector.broadcast %11 : vector<1x128xf32> to vector<8x128xf32>
    %16 = arith.addf %14, %15 : vector<8x128xf32>
    %c0_16 = arith.constant 0 : index
    %c0_17 = arith.constant 0 : index
    %17 = vector.load %arg10[%c0_16, %c0_17] : memref<128x128xf32, #tpu.memory_space<vmem>>, vector<128x128xf32>
    %cst_18 = arith.constant dense<0.000000e+00> : vector<8x128xf32>
    %18 = tpu.matmul %16, %17, %cst_18 {dimension_numbers = #tpu.dot_dimension_numbers<[1], [0], [0], [1], [0, 0, 1, 1], [], []>} : vector<8x128xf32>, vector<128x128xf32>, vector<8x128xf32> -> vector<8x128xf32>
    %19 = arith.mulf %16, %16 : vector<8x128xf32>
    %c0_19 = arith.constant 0 : index
    %c0_20 = arith.constant 0 : index
    %20 = vector.load %arg10[%c0_19, %c0_20] : memref<128x128xf32, #tpu.memory_space<vmem>>, vector<128x128xf32>
    %cst_21 = arith.constant dense<0.000000e+00> : vector<8x128xf32>
    %21 = tpu.matmul %19, %20, %cst_21 {dimension_numbers = #tpu.dot_dimension_numbers<[1], [0], [0], [1], [0, 0, 1, 1], [], []>} : vector<8x128xf32>, vector<128x128xf32>, vector<8x128xf32> -> vector<8x128xf32>
    %22 = arith.mulf %18, %18 : vector<8x128xf32>
    %23 = arith.subf %21, %22 : vector<8x128xf32>
    %cst_22 = arith.constant 0.000000e+00 : f32
    %24 = vector.broadcast %cst_22 : f32 to vector<8x128xf32>
    %25 = arith.maximumf %23, %24 : vector<8x128xf32>
    %c0_23 = arith.constant 0 : index
    %c1 = arith.constant 1 : index
    %c0_24 = arith.constant 0 : index
    %26 = vector.load %arg7[%c0_23, %c1, %c0_24] : memref<1x3x128xf32, #tpu.memory_space<vmem>>, vector<1x1x128xf32>
    %27 = vector.shape_cast %26 : vector<1x1x128xf32> to vector<1x128xf32>
    %c0_25 = arith.constant 0 : index
    %c2 = arith.constant 2 : index
    %c0_26 = arith.constant 0 : index
    %28 = vector.load %arg7[%c0_25, %c2, %c0_26] : memref<1x3x128xf32, #tpu.memory_space<vmem>>, vector<1x1x128xf32>
    %29 = vector.shape_cast %28 : vector<1x1x128xf32> to vector<1x128xf32>
    %30 = arith.subf %16, %18 : vector<8x128xf32>
    %cst_27 = arith.constant 9.99999974E-6 : f32
    %31 = vector.broadcast %cst_27 : f32 to vector<8x128xf32>
    %32 = arith.addf %25, %31 : vector<8x128xf32>
    %33 = math.rsqrt %32 : vector<8x128xf32>
    %34 = arith.mulf %30, %33 : vector<8x128xf32>
    %35 = vector.broadcast %27 : vector<1x128xf32> to vector<8x128xf32>
    %36 = arith.mulf %34, %35 : vector<8x128xf32>
    %37 = vector.broadcast %29 : vector<1x128xf32> to vector<8x128xf32>
    %38 = arith.addf %36, %37 : vector<8x128xf32>
    %cst_28 = arith.constant 5.000000e-01 : f32
    %39 = vector.broadcast %cst_28 : f32 to vector<8x128xf32>
    %40 = arith.mulf %39, %38 : vector<8x128xf32>
    %cst_29 = arith.constant 0.707106769 : f32
    %41 = vector.broadcast %cst_29 : f32 to vector<8x128xf32>
    %42 = arith.mulf %38, %41 : vector<8x128xf32>
    %43 = math.erf %42 : vector<8x128xf32>
    %cst_30 = arith.constant 1.000000e+00 : f32
    %44 = vector.broadcast %cst_30 : f32 to vector<8x128xf32>
    %45 = arith.addf %44, %43 : vector<8x128xf32>
    %46 = arith.mulf %40, %45 : vector<8x128xf32>
    %c0_31 = arith.constant 0 : index
    %c0_32 = arith.constant 0 : index
    %c0_33 = arith.constant 0 : index
    %47 = vector.load %arg8[%c0_31, %c0_32, %c0_33] : memref<1x128x128xf32, #tpu.memory_space<vmem>>, vector<1x128x128xf32>
    %48 = vector.shape_cast %47 : vector<1x128x128xf32> to vector<128x128xf32>
    %cst_34 = arith.constant dense<0.000000e+00> : vector<8x128xf32>
    %49 = tpu.matmul %46, %48, %cst_34 {dimension_numbers = #tpu.dot_dimension_numbers<[1], [0], [0], [1], [0, 0, 1, 1], [], []>} : vector<8x128xf32>, vector<128x128xf32>, vector<8x128xf32> -> vector<8x128xf32>
    %c0_i32 = arith.constant 0 : i32
    %50 = arith.cmpi eq, %arg1, %c0_i32 : i32
    %51 = arith.extui %50 : i1 to i32
    %c0_i32_35 = arith.constant 0 : i32
    %52 = arith.cmpi ne, %51, %c0_i32_35 : i32
    scf.if %52 {
      %c0_38 = arith.constant 0 : index
      %c0_39 = arith.constant 0 : index
      %56 = vector.load %arg9[%c0_38, %c0_39] : memref<1x128xf32, #tpu.memory_space<vmem>>, vector<1x128xf32>
      %57 = vector.broadcast %56 : vector<1x128xf32> to vector<8x128xf32>
      %58 = arith.addf %49, %57 : vector<8x128xf32>
      %c0_40 = arith.constant 0 : index
      %c0_41 = arith.constant 0 : index
      %59 = vector.load %arg11[%c0_40, %c0_41] : memref<8x128xf32, #tpu.memory_space<vmem>>, vector<8x128xf32>
      tpu.vector_store %arg11[%c0_40, %c0_41], %58 {strides = array<i32>} : memref<8x128xf32, #tpu.memory_space<vmem>>, vector<8x128xf32>,
    } else {
    }
    %c0_i32_36 = arith.constant 0 : i32
    %53 = arith.cmpi sgt, %arg1, %c0_i32_36 : i32
    %54 = arith.extui %53 : i1 to i32
    %c0_i32_37 = arith.constant 0 : i32
    %55 = arith.cmpi ne, %54, %c0_i32_37 : i32
    scf.if %55 {
      %c0_38 = arith.constant 0 : index
      %c0_39 = arith.constant 0 : index
      %56 = vector.load %arg11[%c0_38, %c0_39] : memref<8x128xf32, #tpu.memory_space<vmem>>, vector<8x128xf32>
      %57 = arith.addf %56, %49 : vector<8x128xf32>
      %c0_40 = arith.constant 0 : index
      %c0_41 = arith.constant 0 : index
      %58 = vector.load %arg11[%c0_40, %c0_41] : memref<8x128xf32, #tpu.memory_space<vmem>>, vector<8x128xf32>
      tpu.vector_store %arg11[%c0_40, %c0_41], %57 {strides = array<i32>} : memref<8x128xf32, #tpu.memory_space<vmem>>, vector<8x128xf32>,
    } else {
    }
    return
  }
  func.func @transform_0(%arg0: i32, %arg1: i32) -> (i32, i32) {
    %c0_i32 = arith.constant 0 : i32
    %c0_i32_0 = arith.constant 0 : i32
    return %arg0, %c0_i32 : i32, i32
  }
  func.func @transform_1(%arg0: i32, %arg1: i32) -> (i32, i32, i32) {
    %c0_i32 = arith.constant 0 : i32
    %c0_i32_0 = arith.constant 0 : i32
    %c0_i32_1 = arith.constant 0 : i32
    return %arg1, %c0_i32, %c0_i32_0 : i32, i32, i32
  }
  func.func @transform_2(%arg0: i32, %arg1: i32) -> (i32, i32) {
    %c0_i32 = arith.constant 0 : i32
    %c0_i32_0 = arith.constant 0 : i32
    %c0_i32_1 = arith.constant 0 : i32
    return %c0_i32, %c0_i32_0 : i32, i32
  }
  func.func @transform_3(%arg0: i32, %arg1: i32) -> (i32, i32) {
    %c0_i32 = arith.constant 0 : i32
    %c0_i32_0 = arith.constant 0 : i32
    %c0_i32_1 = arith.constant 0 : i32
    return %c0_i32, %c0_i32_0 : i32, i32
  }
  func.func @transform_4(%arg0: i32, %arg1: i32) -> (i32, i32, i32) {
    %c0_i32 = arith.constant 0 : i32
    %c0_i32_0 = arith.constant 0 : i32
    %c0_i32_1 = arith.constant 0 : i32
    return %arg1, %c0_i32, %c0_i32_0 : i32, i32, i32
  }
  func.func @transform_5(%arg0: i32, %arg1: i32) -> (i32, i32, i32) {
    %c0_i32 = arith.constant 0 : i32
    %c0_i32_0 = arith.constant 0 : i32
    %c0_i32_1 = arith.constant 0 : i32
    return %arg1, %c0_i32, %c0_i32_0 : i32, i32, i32
  }
  func.func @transform_6(%arg0: i32, %arg1: i32) -> (i32, i32, i32) {
    %c0_i32 = arith.constant 0 : i32
    %c0_i32_0 = arith.constant 0 : i32
    %c0_i32_1 = arith.constant 0 : i32
    return %arg1, %c0_i32, %c0_i32_0 : i32, i32, i32
  }
  func.func @transform_7(%arg0: i32, %arg1: i32) -> (i32, i32) {
    %c0_i32 = arith.constant 0 : i32
    %c0_i32_0 = arith.constant 0 : i32
    %c0_i32_1 = arith.constant 0 : i32
    return %c0_i32, %c0_i32_0 : i32, i32
  }
  func.func @transform_8(%arg0: i32, %arg1: i32) -> (i32, i32) {
    %c0_i32 = arith.constant 0 : i32
    %c0_i32_0 = arith.constant 0 : i32
    %c0_i32_1 = arith.constant 0 : i32
    return %c0_i32, %c0_i32_0 : i32, i32
  }
  func.func @transform_9(%arg0: i32, %arg1: i32) -> (i32, i32) {
    %c0_i32 = arith.constant 0 : i32
    %c0_i32_0 = arith.constant 0 : i32
    return %arg0, %c0_i32 : i32, i32
  }
}

</mosaic_0001>

<llo_original>
// kernel: tpu_custom_call.1
$region0: #{tpu_custom_call.1}
  #allocation0 [shape = 'u32[]', space=smem, size = 0x4, offset = 0x4, fixed_abs, tag = 'smem constant byte address 0x4 - core index']
  #allocation1 [shape = 'u32[72,128]{1,0:T(1,128)}', space=vmem, size = 0x9000, scoped, tag = 'internal scratch']
  %s0 = inlined_call_operand.vmem [shape: f32[8,4], index: 0, kind: input, shape index: {}]
  %s1 = inlined_call_operand.vmem [shape: f32[1,4,4], index: 1, kind: input, shape index: {}]
  %s2 = inlined_call_operand.vmem [shape: f32[4,128], index: 2, kind: input, shape index: {}]
  %s3 = inlined_call_operand.vmem [shape: f32[1,128], index: 3, kind: input, shape index: {}]
  %s4 = inlined_call_operand.hbm [shape: f32[1,128,128], index: 4, kind: input, shape index: {}]
  %s5 = inlined_call_operand.vmem [shape: f32[1,3,128], index: 5, kind: input, shape index: {}]
  %s6 = inlined_call_operand.hbm [shape: f32[1,128,128], index: 6, kind: input, shape index: {}]
  %s7 = inlined_call_operand.vmem [shape: f32[1,128], index: 7, kind: input, shape index: {}]
  %s8 = inlined_call_operand.hbm [shape: f32[128,128], index: 8, kind: input, shape index: {}]
  %s9 = inlined_call_operand.hbm [shape: f32[8,128], index: 9, kind: output, shape index: {}]
  %s10 = sld [smem:[#allocation0]]
  $region66: #{tpu_custom_call.1} parent=0
    _
  %s12 = ssub.s32 1, %s10
  %s13 = scalar_select 0, %s12, %s10
  $region1: #{tpu_custom_call.1} parent=0
    #allocation2 [shape = 'u8[65536]{0}', space=vmem, size = 0x10000, scoped, tag = 'input window, operand 4, single buffered']
    #allocation3 [shape = 's32[1]{0}', space=sflag, size = 0x4, scoped, tag = 'scoped memory for tpu_custom_call.1']
    #allocation4 [shape = 's32[1]{0}', space=sflag, size = 0x4, scoped, tag = 'scoped memory for tpu_custom_call.1']
    #allocation5 [shape = 'u8[65536]{0}', space=vmem, size = 0x10000, scoped, tag = 'input window, operand 6, single buffered']
    #allocation6 [shape = 's32[1]{0}', space=sflag, size = 0x4, scoped, tag = 'scoped memory for tpu_custom_call.1']
    #allocation7 [shape = 'u8[65536]{0}', space=vmem, size = 0x10000, scoped, tag = 'input window, operand 8, single buffered']
    #allocation8 [shape = 'u8[4096]{0}', space=vmem, size = 0x1000, scoped, tag = 'output window, operand 0, single buffered']
    %14 = vsyncpa [#allocation3], 0
    %15 = vsyncpa [#allocation6], 0
    %16 = vsyncpa [#allocation4], 0
    // Predicated region
    $region2: #{tpu_custom_call.1} parent=1 // pred_check
      _
    $region3: #{tpu_custom_call.1} parent=1 // pred_check_branch
      %18 = sbr.rel (0) target = $region5
    $region4: #{tpu_custom_call.1} parent=1 // pred_region
      _
    $region5: #{tpu_custom_call.1} parent=1 // pred_fallthru
      _
    // Predicated region
    $region6: #{tpu_custom_call.1} parent=1 // pred_check
      _
    $region7: #{tpu_custom_call.1} parent=1 // pred_check_branch
      %20 = sbr.rel (0) target = $region9
    $region8: #{tpu_custom_call.1} parent=1 // pred_region
      _
    $region9: #{tpu_custom_call.1} parent=1 // pred_fallthru
      _
    // Predicated region
    $region10: #{tpu_custom_call.1} parent=1 // pred_check
      _
    $region11: #{tpu_custom_call.1} parent=1 // pred_check_branch
      %22 = sbr.rel (0) target = $region13
    $region12: #{tpu_custom_call.1} parent=1 // pred_region
      _
    $region13: #{tpu_custom_call.1} parent=1 // pred_fallthru
      _
    // Predicated region
    $region14: #{tpu_custom_call.1} parent=1 // pred_check
      _
    $region15: #{tpu_custom_call.1} parent=1 // pred_check_branch
      %24 = sbr.rel (0) target = $region17
    $region16: #{tpu_custom_call.1} parent=1 // pred_region
      _
    $region17: #{tpu_custom_call.1} parent=1 // pred_fallthru
      _
    // Predicated region
    $region18: #{tpu_custom_call.1} parent=1 // pred_check
      _
    $region19: #{tpu_custom_call.1} parent=1 // pred_check_branch
      %26 = sbr.rel (0) target = $region21
    $region20: #{tpu_custom_call.1} parent=1 // pred_region
      %28 = vsyncadd [#allocation3], 0
      %s29 = sshll.u32 %s4, 4
      %s30 = int_to_ptr.hbm [resolvable:$true] %s29
      %s31 = sshll.u32 [#allocation2], 4
      %s32 = int_to_ptr.vmem [resolvable:$true] %s31
      %37 = dma.hbm_to_vmem [thread:$0]  %s30, 2048, %s32, [#allocation3], 128, 128, 8
    $region21: #{tpu_custom_call.1} parent=1 // pred_fallthru
      _
    // Predicated region
    $region22: #{tpu_custom_call.1} parent=1 // pred_check
      _
    $region23: #{tpu_custom_call.1} parent=1 // pred_check_branch
      %39 = sbr.rel (0) target = $region25
    $region24: #{tpu_custom_call.1} parent=1 // pred_region
      _
    $region25: #{tpu_custom_call.1} parent=1 // pred_fallthru
      _
    // Predicated region
    $region26: #{tpu_custom_call.1} parent=1 // pred_check
      _
    $region27: #{tpu_custom_call.1} parent=1 // pred_check_branch
      %41 = sbr.rel (0) target = $region29
    $region28: #{tpu_custom_call.1} parent=1 // pred_region
      %43 = vsyncadd [#allocation6], 0
      %s44 = sshll.u32 %s6, 4
      %s45 = int_to_ptr.hbm [resolvable:$true] %s44
      %s46 = sshll.u32 [#allocation5], 4
      %s47 = int_to_ptr.vmem [resolvable:$true] %s46
      %52 = dma.hbm_to_vmem [thread:$0]  %s45, 2048, %s47, [#allocation6], 128, 128, 8
    $region29: #{tpu_custom_call.1} parent=1 // pred_fallthru
      _
    // Predicated region
    $region30: #{tpu_custom_call.1} parent=1 // pred_check
      _
    $region31: #{tpu_custom_call.1} parent=1 // pred_check_branch
      %54 = sbr.rel (0) target = $region33
    $region32: #{tpu_custom_call.1} parent=1 // pred_region
      _
    $region33: #{tpu_custom_call.1} parent=1 // pred_fallthru
      _
    // Predicated region
    $region34: #{tpu_custom_call.1} parent=1 // pred_check
      _
    $region35: #{tpu_custom_call.1} parent=1 // pred_check_branch
      %56 = sbr.rel (0) target = $region37
    $region36: #{tpu_custom_call.1} parent=1 // pred_region
      %58 = vsyncadd [#allocation6], 0
      %s59 = sshll.u32 %s8, 4
      %s60 = int_to_ptr.hbm [resolvable:$true] %s59
      %s61 = sshll.u32 [#allocation7], 4
      %s62 = int_to_ptr.vmem [resolvable:$true] %s61
      %67 = dma.hbm_to_vmem [thread:$0]  %s60, 2048, %s62, [#allocation6], 128, 128, 8
    $region37: #{tpu_custom_call.1} parent=1 // pred_fallthru
      _
    // Predicated region
    $region38: #{tpu_custom_call.1} parent=1 // pred_check
      _
    $region39: #{tpu_custom_call.1} parent=1 // pred_check_branch
      %69 = sbr.rel (0) target = $region41
    $region40: #{tpu_custom_call.1} parent=1 // pred_region
      %71 = dma.done [#allocation3], 2048
    $region41: #{tpu_custom_call.1} parent=1 // pred_fallthru
      _
    // Predicated region
    $region42: #{tpu_custom_call.1} parent=1 // pred_check
      _
    $region43: #{tpu_custom_call.1} parent=1 // pred_check_branch
      %73 = sbr.rel (0) target = $region45
    $region44: #{tpu_custom_call.1} parent=1 // pred_region
      %75 = dma.done [#allocation6], 2048
    $region45: #{tpu_custom_call.1} parent=1 // pred_fallthru
      _
    // Predicated region
    $region46: #{tpu_custom_call.1} parent=1 // pred_check
      _
    $region47: #{tpu_custom_call.1} parent=1 // pred_check_branch
      %77 = sbr.rel (0) target = $region49
    $region48: #{tpu_custom_call.1} parent=1 // pred_region
      %79 = dma.done [#allocation6], 2048
    $region49: #{tpu_custom_call.1} parent=1 // pred_fallthru
      _
    %v80 = vld [vmem:[%s0] sm:$0xff]
    %v81 = vld [vmem:[%s1] sm:$0xf]
    %vm82 = vcmask 31744
    %v84 = vsel %vm82, %v80, 0
    %vm86 = vcmask 1043456
    %v88 = vsel %vm86, %v81, 0
    %90 = vmatpush.msra.mxu0 0.0
    %91 = vmatpush.msra.mxu0 0.0
    %92 = vmatpush.msra.mxu0 0.0
    %93 = vmatpush.msra.mxu0 0.0
    %94 = vmatpush.msra.mxu0 0.0
    %95 = vmatpush.msra.mxu0 0.0
    %96 = vmatpush.msra.mxu0 0.0
    %97 = vmatpush.msra.mxu0 0.0
    %98 = vmatpush.msra.mxu0 0.0
    %99 = vmatpush.msra.mxu0 0.0
    %100 = vmatpush.msra.mxu0 0.0
    %101 = vmatpush.msra.mxu0 0.0
    %102 = vmatpush.msra.mxu0 0.0
    %103 = vmatpush.msra.mxu0 0.0
    %104 = vmatpush.msra.mxu0 0.0
    %105 = vmatpush.msra.mxu0 %v88
    %106 = vmatmul.f32.gmra.mxu0 %v84
    %v107 = vpop.f32.mrf.mxu0
    %v108 = vadd.f32 0.0, %v107
    %109 = vdwg.mxu0
    %v110 = vld [vmem:[%s2] sm:$0xf]
    %v111 = vld [vmem:[%s3] sm:$0x1]
    %v113 = vperm.slane %v111, 0
    %v116 = vsel %vm82, %v108, 0
    %v119 = vsel %vm86, %v110, 0
    %121 = vmatpush.msra.mxu0 0.0
    %122 = vmatpush.msra.mxu0 0.0
    %123 = vmatpush.msra.mxu0 0.0
    %124 = vmatpush.msra.mxu0 0.0
    %125 = vmatpush.msra.mxu0 0.0
    %126 = vmatpush.msra.mxu0 0.0
    %127 = vmatpush.msra.mxu0 0.0
    %128 = vmatpush.msra.mxu0 0.0
    %129 = vmatpush.msra.mxu0 0.0
    %130 = vmatpush.msra.mxu0 0.0
    %131 = vmatpush.msra.mxu0 0.0
    %132 = vmatpush.msra.mxu0 0.0
    %133 = vmatpush.msra.mxu0 0.0
    %134 = vmatpush.msra.mxu0 0.0
    %135 = vmatpush.msra.mxu0 0.0
    %136 = vmatpush.msra.mxu0 %v119
    %137 = vmatmul.f32.gmra.mxu0 %v116
    %v138 = vpop.f32.mrf.mxu0
    %v139 = vadd.f32 %v113, %v138
    %140 = vdwg.mxu0
    %v141 = vand.u32 2147483647, %v139
    %vm142 = vcmp.le.f32.partialorder %v141, 0.7853982
    %vm143 = vcmp.lt.s32.totalorder %v139, 0
    %v144 = vand.u32 %v139, 2139095040
    %v145 = vshrl.u32 %v144, 23
    %v146 = vsub.s32 %v145, 127
    %v147 = vand.u32 2147483647, %v139
    %v148 = vand.u32 %v147, 8388607
    %v149 = vor.u32 %v148, 8388608
    %v150 = vsub.s32 0, %v149
    %v151 = vadd.s32 %v146, 1
    %vm152 = vcmp.gt.s32.totalorder %v151, 0
    %v153 = vsel %vm152, %v151, 0
    %v154 = vshrl.u32 %v153, 5
    %v155 = vand.u32 %v153, 31
    %v156 = vsub.s32 32, %v155
    %v157 = vshrl.u32 683565275, %v156
    %v158 = vshll.u32 683565275, %v155
    %v159 = vshrl.u32 2475754826, %v156
    %v160 = vor.u32 %v158, %v159
    %v161 = vshll.u32 2475754826, %v155
    %v162 = vshrl.u32 2131351028, %v156
    %v163 = vor.u32 %v161, %v162
    %v164 = vshll.u32 2131351028, %v155
    %v165 = vshrl.u32 2102212464, %v156
    %v166 = vor.u32 %v164, %v165
    %v167 = vshll.u32 2102212464, %v155
    %v168 = vshrl.u32 920167782, %v156
    %v169 = vor.u32 %v167, %v168
    %v170 = vshll.u32 920167782, %v155
    %v171 = vshrl.u32 1326507024, %v156
    %v172 = vor.u32 %v170, %v171
    %vm173 = vcmp.lt.s32.totalorder %v154, 1
    %vm174 = vcmp.lt.s32.totalorder %v154, 2
    %vm175 = vcmp.lt.s32.totalorder %v154, 3
    %vm176 = vcmp.lt.s32.totalorder %v154, 4
    %v177 = vsel %vm173, %v157, %v160
    %v178 = vsel %vm176, %v166, 2102212464
    %v179 = vsel %vm175, %v163, %v178
    %v180 = vsel %vm174, %v177, %v179
    %v181 = vsel %vm173, %v160, %v163
    %v182 = vsel %vm176, %v169, 920167782
    %v183 = vsel %vm175, %v166, %v182
    %v184 = vsel %vm174, %v181, %v183
    %v185 = vsel %vm173, %v163, %v166
    %v186 = vsel %vm176, %v172, 1326507024
    %v187 = vsel %vm175, %v169, %v186
    %v188 = vsel %vm174, %v185, %v187
    %v189 = vshll.u32 %v149, 8
    %v190 = vand.u32 %v189, 65535
    %v191 = vshrl.u32 %v189, 16
    %v192 = vand.u32 %v188, 65535
    %v193 = vshrl.u32 %v188, 16
    %v194 = vmul.u32 %v190, %v192
    %v195 = vmul.u32 %v190, %v193
    %v196 = vmul.u32 %v191, %v192
    %v197 = vmul.u32 %v191, %v193
    %v198 = vshll.u32 %v195, 16
    %v199 = vshrl.u32 %v195, 16
    %v200 = vshll.u32 %v196, 16
    %v201 = vshrl.u32 %v196, 16
    %vm202 = vc.u32 %v194, %v198
    %v203 = vsel %vm202, 1, 0
    %v204 = vadd.s32 %v194, %v198
    %v205 = vadd.s32 %v197, %v203
    %vm206 = vc.u32 %v204, %v200
    %v207 = vsel %vm206, 1, 0
    %v208 = vadd.s32 %v204, %v200
    %v209 = vadd.s32 %v205, %v207
    %v210 = vadd.s32 %v209, %v199
    %v211 = vadd.s32 %v210, %v201
    %v212 = vand.u32 %v189, 65535
    %v213 = vshrl.u32 %v189, 16
    %v214 = vand.u32 %v184, 65535
    %v215 = vshrl.u32 %v184, 16
    %v216 = vmul.u32 %v212, %v214
    %v217 = vmul.u32 %v212, %v215
    %v218 = vmul.u32 %v213, %v214
    %v219 = vmul.u32 %v213, %v215
    %v220 = vshll.u32 %v217, 16
    %v221 = vshrl.u32 %v217, 16
    %v222 = vshll.u32 %v218, 16
    %v223 = vshrl.u32 %v218, 16
    %vm224 = vc.u32 %v216, %v220
    %v225 = vsel %vm224, 1, 0
    %v226 = vadd.s32 %v216, %v220
    %v227 = vadd.s32 %v219, %v225
    %vm228 = vc.u32 %v226, %v222
    %v229 = vsel %vm228, 1, 0
    %v230 = vadd.s32 %v226, %v222
    %v231 = vadd.s32 %v227, %v229
    %v232 = vadd.s32 %v231, %v221
    %v233 = vadd.s32 %v232, %v223
    %v234 = vmul.u32 %v189, %v180
    %v235 = vadd.s32 %v211, %v230
    %vm236 = vc.u32 %v211, %v230
    %v237 = vadd.s32 %v233, 1
    %v238 = vsel %vm236, %v237, %v233
    %v239 = vadd.s32 %v234, %v238
    %v240 = vadd.s32 %v239, 536870912
    %v241 = vshrl.u32 %v240, 30
    %v242 = vshll.u32 %v241, 30
    %v243 = vsub.s32 %v239, %v242
    %vm244 = vcmp.lt.s32.totalorder %v243, 0
    %v245 = vsub.s32 0, %v243
    %v246 = vsel %vm244, %v245, %v243
    %v247 = vclz %v246
    %v248 = vsub.s32 %v247, 2
    %vm249 = vcmp.gt.s32.totalorder 0, %v248
    %v250 = vsel %vm249, 0, %v248
    %v251 = vsub.s32 32, %v250
    %v252 = vshll.u32 %v243, %v250
    %v253 = vshrl.u32 %v235, %v251
    %v254 = vor.u32 %v252, %v253
    %v255 = vsub.s32 4294967266, %v250
    %v256 = vadd.s32 %v255, 127
    %v257 = vshll.u32 %v256, 23
    %v258 = vor.u32 4788187, %v257
    %v259 = vand.u32 2147483647, %v258
    %v261 = vcvt.s32.f32 %v254
    %v262 = vmul.f32 %v261, %v259
    %v263 = vxor.u32 %v262, 2147483648
    %v264 = vsel %vm143, %v263, %v262
    %v265 = vsub.s32 4, %v241
    %v266 = vsel %vm143, %v265, %v241
    %v267 = vsel %vm142, %v139, %v264
    %v268 = vsel %vm142, 0, %v266
    %v269 = vmul.f32 %v267, %v267
    %v270 = vmul.f32 %v269, -0.001358992
    %v271 = vadd.f32 %v270, 0.041655596
    %v272 = vmul.f32 %v269, %v271
    %v273 = vadd.f32 %v272, -0.4999988
    %v274 = vmul.f32 %v269, %v273
    %v275 = vadd.f32 1.0, %v274
    %v276 = vmul.f32 %v267, %v267
    %v277 = vmul.f32 %v276, -0.00019511016
    %v278 = vadd.f32 %v277, 0.008332121
    %v279 = vmul.f32 %v276, %v278
    %v280 = vadd.f32 %v279, -0.16666654
    %v281 = vmul.f32 %v276, %v280
    %v282 = vadd.f32 %v281, 1.0
    %v283 = vmul.f32 %v282, %v267
    %vm284 = vweird.f32 %v139
    %v285 = vadd.s32 %v268, 3
    %v286 = vand.u32 %v285, 3
    %vm287 = vcmp.lt.s32.totalorder %v286, 2
    %vm288 = vcmp.eq.s32.totalorder %v286, 0
    %v289 = vxor.u32 %v283, 2147483648
    %v290 = vsel %vm288, %v275, %v289
    %vm291 = vcmp.eq.s32.totalorder %v286, 2
    %v292 = vxor.u32 %v275, 2147483648
    %v293 = vsel %vm291, %v292, %v283
    %v294 = vsel %vm287, %v290, %v293
    %v295 = vsel %vm284, nan, %v294
    %v296 = vld [vmem:[%s5] sm:$0x1]
    %v297 = vld [vmem:[#allocation2] sm:$0xff]
    %v298 = vld [vmem:[#allocation2 + $0x8] sm:$0xff]
    %v299 = vld [vmem:[#allocation2 + $0x10] sm:$0xff]
    %v300 = vld [vmem:[#allocation2 + $0x18] sm:$0xff]
    %v301 = vld [vmem:[#allocation2 + $0x20] sm:$0xff]
    %v302 = vld [vmem:[#allocation2 + $0x28] sm:$0xff]
    %v303 = vld [vmem:[#allocation2 + $0x30] sm:$0xff]
    %v304 = vld [vmem:[#allocation2 + $0x38] sm:$0xff]
    %v305 = vld [vmem:[#allocation2 + $0x40] sm:$0xff]
    %v306 = vld [vmem:[#allocation2 + $0x48] sm:$0xff]
    %v307 = vld [vmem:[#allocation2 + $0x50] sm:$0xff]
    %v308 = vld [vmem:[#allocation2 + $0x58] sm:$0xff]
    %v309 = vld [vmem:[#allocation2 + $0x60] sm:$0xff]
    %v310 = vld [vmem:[#allocation2 + $0x68] sm:$0xff]
    %v311 = vld [vmem:[#allocation2 + $0x70] sm:$0xff]
    %v312 = vld [vmem:[#allocation2 + $0x78] sm:$0xff]
    %v313 = vperm.slane %v296, 0
    %314 = vmatpush.msra.mxu0 %v312
    %315 = vmatpush.msra.mxu0 %v311
    %316 = vmatpush.msra.mxu0 %v310
    %317 = vmatpush.msra.mxu0 %v309
    %318 = vmatpush.msra.mxu0 %v308
    %319 = vmatpush.msra.mxu0 %v307
    %320 = vmatpush.msra.mxu0 %v306
    %321 = vmatpush.msra.mxu0 %v305
    %322 = vmatpush.msra.mxu0 %v304
    %323 = vmatpush.msra.mxu0 %v303
    %324 = vmatpush.msra.mxu0 %v302
    %325 = vmatpush.msra.mxu0 %v301
    %326 = vmatpush.msra.mxu0 %v300
    %327 = vmatpush.msra.mxu0 %v299
    %328 = vmatpush.msra.mxu0 %v298
    %329 = vmatpush.msra.mxu0 %v297
    %330 = vmatmul.f32.gmra.mxu0 %v295
    %v331 = vpop.f32.mrf.mxu0
    %v332 = vadd.f32 %v313, %v331
    %333 = vdwg.mxu0
    %v334 = vld [vmem:[#allocation7] sm:$0xff]
    %v335 = vld [vmem:[#allocation7 + $0x8] sm:$0xff]
    %v336 = vld [vmem:[#allocation7 + $0x10] sm:$0xff]
    %v337 = vld [vmem:[#allocation7 + $0x18] sm:$0xff]
    %v338 = vld [vmem:[#allocation7 + $0x20] sm:$0xff]
    %v339 = vld [vmem:[#allocation7 + $0x28] sm:$0xff]
    %v340 = vld [vmem:[#allocation7 + $0x30] sm:$0xff]
    %v341 = vld [vmem:[#allocation7 + $0x38] sm:$0xff]
    %v342 = vld [vmem:[#allocation7 + $0x40] sm:$0xff]
    %v343 = vld [vmem:[#allocation7 + $0x48] sm:$0xff]
    %v344 = vld [vmem:[#allocation7 + $0x50] sm:$0xff]
    %v345 = vld [vmem:[#allocation7 + $0x58] sm:$0xff]
    %v346 = vld [vmem:[#allocation7 + $0x60] sm:$0xff]
    %v347 = vld [vmem:[#allocation7 + $0x68] sm:$0xff]
    %v348 = vld [vmem:[#allocation7 + $0x70] sm:$0xff]
    %v349 = vld [vmem:[#allocation7 + $0x78] sm:$0xff]
    %350 = vmatpush.msra.mxu0 %v349
    %351 = vmatpush.msra.mxu0 %v348
    %352 = vmatpush.msra.mxu0 %v347
    %353 = vmatpush.msra.mxu0 %v346
    %354 = vmatpush.msra.mxu0 %v345
    %355 = vmatpush.msra.mxu0 %v344
    %356 = vmatpush.msra.mxu0 %v343
    %357 = vmatpush.msra.mxu0 %v342
    %358 = vmatpush.msra.mxu0 %v341
    %359 = vmatpush.msra.mxu0 %v340
    %360 = vmatpush.msra.mxu0 %v339
    %361 = vmatpush.msra.mxu0 %v338
    %362 = vmatpush.msra.mxu0 %v337
    %363 = vmatpush.msra.mxu0 %v336
    %364 = vmatpush.msra.mxu0 %v335
    %365 = vmatpush.msra.mxu0 %v334
    %366 = vmatmul.f32.gmra.mxu0 %v332
    %v367 = vpop.f32.mrf.mxu0
    %v368 = vadd.f32 0.0, %v367
    %369 = vdwg.mxu0
    %v370 = vmul.f32 %v332, %v332
    %371 = vmatpush.msra.mxu0 %v349
    %372 = vmatpush.msra.mxu0 %v348
    %373 = vmatpush.msra.mxu0 %v347
    %374 = vmatpush.msra.mxu0 %v346
    %375 = vmatpush.msra.mxu0 %v345
    %376 = vmatpush.msra.mxu0 %v344
    %377 = vmatpush.msra.mxu0 %v343
    %378 = vmatpush.msra.mxu0 %v342
    %379 = vmatpush.msra.mxu0 %v341
    %380 = vmatpush.msra.mxu0 %v340
    %381 = vmatpush.msra.mxu0 %v339
    %382 = vmatpush.msra.mxu0 %v338
    %383 = vmatpush.msra.mxu0 %v337
    %384 = vmatpush.msra.mxu0 %v336
    %385 = vmatpush.msra.mxu0 %v335
    %386 = vmatpush.msra.mxu0 %v334
    %387 = vmatmul.f32.gmra.mxu0 %v370
    %v388 = vpop.f32.mrf.mxu0
    %v389 = vadd.f32 0.0, %v388
    %390 = vdwg.mxu0
    %v391 = vmul.f32 %v368, %v368
    %v392 = vsub.f32 %v389, %v391
    %v393 = vmax.f32 %v392, 0.0
    %v394 = vld [vmem:[%s5 + $0x1] sm:$0x1]
    %v395 = vld [vmem:[%s5 + $0x2] sm:$0x1]
    %v396 = vsub.f32 %v332, %v368
    %v397 = vadd.f32 %v393, 1e-05
    %v398 = vrsqrt.pop %v397
    %v399 = vmul.f32 %v398, %v397
    %v400 = vmul.f32 %v399, %v398
    %v401 = vmul.f32 0.5, %v400
    %v402 = vsub.f32 1.5, %v401
    %v403 = vmul.f32 %v398, %v402
    %vm404 = vweird.f32 %v397
    %vm405 = vweird.f32 %v398
    %vm406 = vmor %vm404, %vm405
    %v407 = vsel %vm406, %v398, %v403
    %v408 = vmul.f32 %v396, %v407
    %v409 = vperm.slane %v394, 0
    %v410 = vmul.f32 %v408, %v409
    %v411 = vperm.slane %v395, 0
    %v412 = vadd.f32 %v410, %v411
    %v413 = vmul.f32 %v412, 0.5
    %v414 = vmul.f32 %v412, 0.70710677
    %v415 = vmul.f32 %v414, %v414
    %v416 = vmin.f32 16.0, %v415
    %v417 = vmul.f32 %v416, 2.1237322e-06
    %v418 = vadd.f32 %v417, 0.00028619796
    %v419 = vmul.f32 %v416, %v418
    %v420 = vadd.f32 %v419, 0.0036580483
    %v421 = vmul.f32 %v416, %v420
    %v422 = vadd.f32 %v421, 0.05243302
    %v423 = vmul.f32 %v416, %v422
    %v424 = vadd.f32 %v423, 0.18741608
    %v425 = vmul.f32 %v416, %v424
    %v426 = vadd.f32 %v425, 1.1283791
    %v427 = vmul.f32 %v414, %v426
    %v428 = vmul.f32 %v416, 3.8918573e-05
    %v429 = vadd.f32 %v428, 0.001143296
    %v430 = vmul.f32 %v416, %v429
    %v431 = vadd.f32 %v430, 0.014752088
    %v432 = vmul.f32 %v416, %v431
    %v433 = vadd.f32 %v432, 0.112945676
    %v434 = vmul.f32 %v416, %v433
    %v435 = vadd.f32 %v434, 0.4994258
    %v436 = vmul.f32 %v416, %v435
    %v437 = vadd.f32 %v436, 1.0
    %v438 = vrcp.pop %v437
    %v439 = vmul.f32 %v437, %v438
    %v440 = vsub.f32 1.0, %v439
    %v441 = vmul.f32 %v438, %v440
    %v442 = vadd.f32 %v438, %v441
    %vm443 = vweird.f32 %v437
    %vm444 = vweird.f32 %v438
    %vm445 = vmor %vm443, %vm444
    %v446 = vsel %vm445, %v438, %v442
    %v447 = vand.u32 2147483647, %v437
    %vm448 = vcmp.eq.f32.partialorder %v447, 8.507059e+37
    %v449 = vand.u32 %v437, 2147483648
    %v450 = vor.u32 1.1754944e-38, %v449
    %v451 = vsel %vm448, %v450, %v446
    %v452 = vmul.f32 %v427, %v451
    %v453 = vmin.f32 %v452, 1.0
    %v454 = vmax.f32 %v453, -1.0
    %v455 = vadd.f32 %v454, 1.0
    %v456 = vmul.f32 %v413, %v455
    %v457 = vld [vmem:[#allocation5] sm:$0xff]
    %v458 = vld [vmem:[#allocation5 + $0x8] sm:$0xff]
    %v459 = vld [vmem:[#allocation5 + $0x10] sm:$0xff]
    %v460 = vld [vmem:[#allocation5 + $0x18] sm:$0xff]
    %v461 = vld [vmem:[#allocation5 + $0x20] sm:$0xff]
    %v462 = vld [vmem:[#allocation5 + $0x28] sm:$0xff]
    %v463 = vld [vmem:[#allocation5 + $0x30] sm:$0xff]
    %v464 = vld [vmem:[#allocation5 + $0x38] sm:$0xff]
    %v465 = vld [vmem:[#allocation5 + $0x40] sm:$0xff]
    %v466 = vld [vmem:[#allocation5 + $0x48] sm:$0xff]
    %v467 = vld [vmem:[#allocation5 + $0x50] sm:$0xff]
    %v468 = vld [vmem:[#allocation5 + $0x58] sm:$0xff]
    %v469 = vld [vmem:[#allocation5 + $0x60] sm:$0xff]
    %v470 = vld [vmem:[#allocation5 + $0x68] sm:$0xff]
    %v471 = vld [vmem:[#allocation5 + $0x70] sm:$0xff]
    %v472 = vld [vmem:[#allocation5 + $0x78] sm:$0xff]
    %473 = vmatpush.msra.mxu0 %v472
    %474 = vmatpush.msra.mxu0 %v471
    %475 = vmatpush.msra.mxu0 %v470
    %476 = vmatpush.msra.mxu0 %v469
    %477 = vmatpush.msra.mxu0 %v468
    %478 = vmatpush.msra.mxu0 %v467
    %479 = vmatpush.msra.mxu0 %v466
    %480 = vmatpush.msra.mxu0 %v465
    %481 = vmatpush.msra.mxu0 %v464
    %482 = vmatpush.msra.mxu0 %v463
    %483 = vmatpush.msra.mxu0 %v462
    %484 = vmatpush.msra.mxu0 %v461
    %485 = vmatpush.msra.mxu0 %v460
    %486 = vmatpush.msra.mxu0 %v459
    %487 = vmatpush.msra.mxu0 %v458
    %488 = vmatpush.msra.mxu0 %v457
    %489 = vmatmul.f32.gmra.mxu0 %v456
    %v490 = vpop.f32.mrf.mxu0
    %v491 = vadd.f32 0.0, %v490
    %492 = vdwg.mxu0
    %p493 = scmp.eq.s32.totalorder 0, 0
    // Predicated region
    $region50: #{tpu_custom_call.1} parent=1 // pred_check
      %p494 = pneg %p493
    $region51: #{tpu_custom_call.1} parent=1 // pred_check_branch
      %496 = sbr.rel (%p494) target = $region53
    $region52: #{tpu_custom_call.1} parent=1 // pred_region
      %v497 = vld [vmem:[%s7] sm:$0x1]
      %v499 = vperm.slane %v497, 0
      %v501 = vadd.f32 %v491, %v499
      %502 = vst [vmem:[#allocation8] sm:$0xff] %v501
    $region53: #{tpu_custom_call.1} parent=1 // pred_fallthru
      _
    %p503 = scmp.gt.s32.totalorder 0, 0
    // Predicated region
    $region54: #{tpu_custom_call.1} parent=1 // pred_check
      %p504 = pneg %p503
    $region55: #{tpu_custom_call.1} parent=1 // pred_check_branch
      %506 = sbr.rel (%p504) target = $region57
    $region56: #{tpu_custom_call.1} parent=1 // pred_region
      %v507 = vld [vmem:[#allocation8] sm:$0xff]
      %v508 = vadd.f32 %v507, %v491
      %509 = vst [vmem:[#allocation8] sm:$0xff] %v508
    $region57: #{tpu_custom_call.1} parent=1 // pred_fallthru
      _
    // Predicated region
    $region58: #{tpu_custom_call.1} parent=1 // pred_check
      _
    $region59: #{tpu_custom_call.1} parent=1 // pred_check_branch
      %511 = sbr.rel (0) target = $region61
    $region60: #{tpu_custom_call.1} parent=1 // pred_region
      %513 = vsyncadd [#allocation4], 0
      %s515 = sshll.u32 [#allocation8], 4
      %s516 = int_to_ptr.vmem [resolvable:$true] %s515
      %s517 = sshll.u32 %s9, 4
      %s518 = int_to_ptr.hbm [resolvable:$true] %s517
      %520 = dma.vmem_to_hbm [thread:$0]  %s516, 128, %s518, [#allocation4]
    $region61: #{tpu_custom_call.1} parent=1 // pred_fallthru
      _
    // Predicated region
    $region62: #{tpu_custom_call.1} parent=1 // pred_check
      _
    $region63: #{tpu_custom_call.1} parent=1 // pred_check_branch
      %522 = sbr.rel (0) target = $region65
    $region64: #{tpu_custom_call.1} parent=1 // pred_region
      %524 = dma.done [#allocation4], 128
    $region65: #{tpu_custom_call.1} parent=1 // pred_fallthru
      _
    %525 = vsyncpa [#allocation3], 1
    %526 = vsyncpa [#allocation6], 1
    %527 = vsyncpa [#allocation4], 1

</llo_original>
